<compile_context>
chip_gen: v5e
topology: v5e:2x2
jax: 0.10.0
libtpu: 0.0.40
codegen_flags: <defaults>
</compile_context>

<pallas_src>
import jax
import jax.numpy as jnp
from jax.experimental import pallas as pl
from jax.experimental.pallas import tpu as pltpu


def _contrast_kernel(scale_ref, x_ref, o_ref):
    # scale_ref: (TM, 1)  per-row (= per (b, c)) contrast factor rc
    # x_ref/o_ref: (TM, TL) lane-dense pixel tiles
    rc = scale_ref[...]                           # broadcast over lanes (cheap)
    o_ref[...] = (x_ref[...] * rc + (rc - 1.0)).astype(o_ref.dtype)


def _tpu_vmem_capacity_bytes():
    """Physical VMEM per TensorCore; conservative fallback if query fails."""
    try:
        return int(pltpu.get_tpu_info().vmem_capacity_bytes)
    except Exception:  # pragma: no cover - older runtimes / CPU tracing
        return 128 << 20


def _pick_tiles(num_rows, row_len, itemsize, target_bytes):
    """Pick (tm, tl) satisfying the TPU (8,128)/full-extent block constraint,
    dtype-aware sublane granularity, lane tiles in 128-multiples, and block
    size ~target_bytes so the grid has enough steps to pipeline."""
    sublane = {4: 8, 2: 16, 1: 32}.get(itemsize, 8)
    row_bytes = row_len * itemsize

    if row_bytes * sublane <= target_bytes or row_len <= 128:
        # Full lane extent; tile rows to hit the target block size.
        tl = row_len
        tm = max(1, target_bytes // max(1, row_bytes))
        tm = min(tm, num_rows)
        if tm < num_rows:
            tm = max(sublane, (tm // sublane) * sublane)
            tm = min(tm, num_rows)
    else:
        # Rows are huge (large H*W): minimal sublane-aligned row tile, tile the
        # lane dimension in 128-multiples (unmasked stores; last tile may be
        # partial and is masked only at the edge).
        tm = min(num_rows, sublane)
        tl = max(1, target_bytes // max(1, tm * itemsize))
        tl = max(512, (tl // 128) * 128)
        tl = min(tl, row_len)
        if tl < row_len:
            tl = max(128, (tl // 128) * 128)
    return tm, tl


def contrast_forward(x, bias, range_param, uniform_noise):
    """x: (B, C, H, W); bias/range_param: (1, C, 1, 1) f32;
    uniform_noise: (B, C) f32 in [-1, 1)."""
    B, C, H, W = x.shape
    R = B * C          # one row per (b, c)
    L = H * W          # lane-dense row length
    itemsize = jnp.dtype(x.dtype).itemsize

    bias_flat = bias.reshape(C).astype(jnp.float32)
    range_flat = range_param.reshape(C).astype(jnp.float32)
    u = uniform_noise.reshape(B, C).astype(jnp.float32)

    # Per-(b, c) contrast factor, computed once (tiny op outside the kernel).
    rc = 1.0 + bias_flat[None, :] + jnp.abs(range_flat)[None, :] * u   # (B, C)
    scale = rc.reshape(R, 1)                                           # (R, 1)

    x2d = x.reshape(R, L)   # free contiguous reshape, lane-dense layout

    # Generation-aware tiling: smaller blocks / VMEM request on v7x (64 MiB).
    vmem_cap = _tpu_vmem_capacity_bytes()
    if vmem_cap <= (64 << 20):
        target_bytes, vmem_limit = 4 << 20, 32 << 20
    else:
        target_bytes, vmem_limit = 8 << 20, 48 << 20

    tm, tl = _pick_tiles(R, L, itemsize, target_bytes)
    grid = (pl.cdiv(R, tm), pl.cdiv(L, tl))

    cost = pl.CostEstimate(
        flops=2 * R * L,                       # one FMA per element
        transcendentals=0,
        bytes_accessed=2 * R * L * itemsize + R * 4,
    )

    # NOTE: if the caller can donate x, adding input_output_aliases={1: 0}
    # avoids an extra HBM allocation; left off here since x is not donated.
    out2d = pl.pallas_call(
        _contrast_kernel,
        out_shape=jax.ShapeDtypeStruct((R, L), x.dtype),
        grid=grid,
        in_specs=[
            pl.BlockSpec((tm, 1), lambda i, j: (i, 0)),    # rc per row
            pl.BlockSpec((tm, tl), lambda i, j: (i, j)),   # x tile
        ],
        out_specs=pl.BlockSpec((tm, tl), lambda i, j: (i, j)),
        compiler_params=pltpu.CompilerParams(
            dimension_semantics=("parallel", "parallel"),
            vmem_limit_bytes=vmem_limit,
        ),
        cost_estimate=cost,
    )(scale, x2d)

    return out2d.reshape(B, C, H, W)


def contrast_reference(x, bias, range_param, uniform_noise):
    """Pure-JAX reference mirroring the PyTorch forward exactly."""
    B, C = x.shape[0], x.shape[1]
    xd = 0.5 * x + 0.5
    rc = 1.0 + bias + jnp.abs(range_param) * uniform_noise.reshape(B, C, 1, 1)
    xd = xd * rc
    return 2.0 * xd - 1.0


if __name__ == "__main__":
    key = jax.random.PRNGKey(0)
    B, C, H, W = 2, 4, 16, 16

    k_x, k_u = jax.random.split(key)
    x = jax.random.normal(k_x, (B, C, H, W), dtype=jnp.float32)

    # Deterministic parameter init, matching nn.Parameter shapes in __init__:
    #   bias  = zeros(1, C, 1, 1);  range = 0.001 * ones(1, C, 1, 1)
    bias = jnp.zeros((1, C, 1, 1), dtype=jnp.float32)
    range_param = 0.001 * jnp.ones((1, C, 1, 1), dtype=jnp.float32)

    # uniform_dist: 2 * rand - 1  -> U(-1, 1), shape (B, C, 1, 1) -> stored (B, C)
    uniform_noise = 2.0 * jax.random.uniform(k_u, (B, C), dtype=jnp.float32) - 1.0

    out = contrast_forward(x, bias, range_param, uniform_noise)
    out = jax.block_until_ready(out)

    ref = contrast_reference(x, bias, range_param, uniform_noise)
    assert out.shape == (B, C, H, W)
    assert out.dtype == jnp.float32
    assert jnp.allclose(out, ref, atol=1e-6, rtol=1e-6)

    print("KERNEL_OK")
</pallas_src>

<mosaic_0001>
module attributes {stable_mosaic.version = 11 : i64} {
  func.func @_contrast_kernel(%arg0: i32, %arg1: i32, %arg2: memref<8x1xf32, #tpu.memory_space<vmem>>, %arg3: memref<8x256xf32, #tpu.memory_space<vmem>>, %arg4: memref<8x256xf32, #tpu.memory_space<vmem>>) attributes {dimension_semantics = [#tpu.dimension_semantics<parallel>, #tpu.dimension_semantics<parallel>], iteration_bounds = array<i64: 1, 1>, scalar_prefetch = 0 : i64, scratch_operands = 0 : i64, tpu.core_type = #tpu.core_type<tc>, window_params = [{transform_indices = @transform_0, window_bounds = array<i64: 8, 1>}, {transform_indices = @transform_1, window_bounds = array<i64: 8, 256>}, {transform_indices = @transform_2, window_bounds = array<i64: 8, 256>}]} {
    %c0 = arith.constant 0 : index
    %c0_0 = arith.constant 0 : index
    %0 = vector.load %arg2[%c0, %c0_0] : memref<8x1xf32, #tpu.memory_space<vmem>>, vector<8x1xf32>
    %c0_1 = arith.constant 0 : index
    %c0_2 = arith.constant 0 : index
    %1 = vector.load %arg3[%c0_1, %c0_2] : memref<8x256xf32, #tpu.memory_space<vmem>>, vector<8x256xf32>
    %2 = vector.broadcast %0 : vector<8x1xf32> to vector<8x256xf32>
    %3 = arith.mulf %1, %2 : vector<8x256xf32>
    %cst = arith.constant 1.000000e+00 : f32
    %4 = vector.broadcast %cst : f32 to vector<8x1xf32>
    %5 = arith.subf %0, %4 : vector<8x1xf32>
    %6 = vector.broadcast %5 : vector<8x1xf32> to vector<8x256xf32>
    %7 = arith.addf %3, %6 : vector<8x256xf32>
    %c0_3 = arith.constant 0 : index
    %c0_4 = arith.constant 0 : index
    %8 = vector.load %arg4[%c0_3, %c0_4] : memref<8x256xf32, #tpu.memory_space<vmem>>, vector<8x256xf32>
    tpu.vector_store %arg4[%c0_3, %c0_4], %7 {strides = array<i32>} : memref<8x256xf32, #tpu.memory_space<vmem>>, vector<8x256xf32>,
    return
  }
  func.func @transform_0(%arg0: i32, %arg1: i32) -> (i32, i32) {
    %c0_i32 = arith.constant 0 : i32
    %c0_i32_0 = arith.constant 0 : i32
    return %arg0, %c0_i32 : i32, i32
  }
  func.func @transform_1(%arg0: i32, %arg1: i32) -> (i32, i32) {
    %c0_i32 = arith.constant 0 : i32
    return %arg0, %arg1 : i32, i32
  }
  func.func @transform_2(%arg0: i32, %arg1: i32) -> (i32, i32) {
    %c0_i32 = arith.constant 0 : i32
    return %arg0, %arg1 : i32, i32
  }
}

</mosaic_0001>

<llo_original>
// kernel: tpu_custom_call.1
$region0: #{tpu_custom_call.1}
  #allocation0 [shape = 'u32[]', space=smem, size = 0x4, offset = 0x4, fixed_abs, tag = 'smem constant byte address 0x4 - core index']
  #allocation1 [shape = 'u32[72,128]{1,0:T(1,128)}', space=vmem, size = 0x9000, scoped, tag = 'internal scratch']
  %s0 = inlined_call_operand.vmem [shape: f32[8,1], index: 0, kind: input, shape index: {}]
  %s1 = inlined_call_operand.hbm [shape: f32[8,256], index: 1, kind: input, shape index: {}]
  %s2 = inlined_call_operand.hbm [shape: f32[8,256], index: 2, kind: output, shape index: {}]
  %s3 = sld [smem:[#allocation0]]
  $region22: #{tpu_custom_call.1} parent=0
    _
  %s5 = ssub.s32 1, %s3
  %s6 = scalar_select 0, %s5, %s3
  $region1: #{tpu_custom_call.1} parent=0
    #allocation2 [shape = 'u8[8192]{0}', space=vmem, size = 0x2000, scoped, tag = 'input window, operand 1, single buffered']
    #allocation3 [shape = 's32[1]{0}', space=sflag, size = 0x4, scoped, tag = 'scoped memory for tpu_custom_call.1']
    #allocation4 [shape = 's32[1]{0}', space=sflag, size = 0x4, scoped, tag = 'scoped memory for tpu_custom_call.1']
    #allocation5 [shape = 'u8[8192]{0}', space=vmem, size = 0x2000, scoped, tag = 'output window, operand 0, single buffered']
    %7 = vsyncpa [#allocation3], 0
    %8 = vsyncpa [#allocation4], 0
    // Predicated region
    $region2: #{tpu_custom_call.1} parent=1 // pred_check
      _
    $region3: #{tpu_custom_call.1} parent=1 // pred_check_branch
      %10 = sbr.rel (0) target = $region5
    $region4: #{tpu_custom_call.1} parent=1 // pred_region
      _
    $region5: #{tpu_custom_call.1} parent=1 // pred_fallthru
      _
    // Predicated region
    $region6: #{tpu_custom_call.1} parent=1 // pred_check
      _
    $region7: #{tpu_custom_call.1} parent=1 // pred_check_branch
      %12 = sbr.rel (0) target = $region9
    $region8: #{tpu_custom_call.1} parent=1 // pred_region
      %14 = vsyncadd [#allocation3], 0
      %s16 = sshll.u32 %s1, 4
      %s17 = int_to_ptr.hbm [resolvable:$true] %s16
      %s18 = sshll.u32 [#allocation2], 4
      %s19 = int_to_ptr.vmem [resolvable:$true] %s18
      %21 = dma.hbm_to_vmem [thread:$0]  %s17, 256, %s19, [#allocation3]
    $region9: #{tpu_custom_call.1} parent=1 // pred_fallthru
      _
    // Predicated region
    $region10: #{tpu_custom_call.1} parent=1 // pred_check
      _
    $region11: #{tpu_custom_call.1} parent=1 // pred_check_branch
      %23 = sbr.rel (0) target = $region13
    $region12: #{tpu_custom_call.1} parent=1 // pred_region
      %25 = dma.done [#allocation3], 256
    $region13: #{tpu_custom_call.1} parent=1 // pred_fallthru
      _
    %v26 = vld [vmem:[%s0] sm:$0xff]
    %v27 = vld [vmem:[#allocation2] sm:$0xff]
    %v28 = vld [vmem:[#allocation2 + $0x8] sm:$0xff]
    %30 = vset.pattern.permute.xlu0 0
    %31 = vperm.xlu0 %30, %v26
    %v32 = vpop.permute.xlu0 %31
    %v34 = vmul.f32 %v27, %v32
    %v35 = vmul.f32 %v28, %v32
    %v36 = vsub.f32 %v26, 1.0
    %38 = vset.pattern.permute.xlu0 0
    %39 = vperm.xlu0 %38, %v36
    %v40 = vpop.permute.xlu0 %39
    %v42 = vadd.f32 %v34, %v40
    %v43 = vadd.f32 %v35, %v40
    %44 = vst [vmem:[#allocation5] sm:$0xff] %v42
    %45 = vst [vmem:[#allocation5 + $0x8] sm:$0xff] %v43
    // Predicated region
    $region14: #{tpu_custom_call.1} parent=1 // pred_check
      _
    $region15: #{tpu_custom_call.1} parent=1 // pred_check_branch
      %47 = sbr.rel (0) target = $region17
    $region16: #{tpu_custom_call.1} parent=1 // pred_region
      %49 = vsyncadd [#allocation4], 0
      %s51 = sshll.u32 [#allocation5], 4
      %s52 = int_to_ptr.vmem [resolvable:$true] %s51
      %s53 = sshll.u32 %s2, 4
      %s54 = int_to_ptr.hbm [resolvable:$true] %s53
      %56 = dma.vmem_to_hbm [thread:$0]  %s52, 256, %s54, [#allocation4]
    $region17: #{tpu_custom_call.1} parent=1 // pred_fallthru
      _
    // Predicated region
    $region18: #{tpu_custom_call.1} parent=1 // pred_check
      _
    $region19: #{tpu_custom_call.1} parent=1 // pred_check_branch
      %58 = sbr.rel (0) target = $region21
    $region20: #{tpu_custom_call.1} parent=1 // pred_region
      %60 = dma.done [#allocation4], 256
    $region21: #{tpu_custom_call.1} parent=1 // pred_fallthru
      _
    %61 = vsyncpa [#allocation3], 1
    %62 = vsyncpa [#allocation4], 1

</llo_original>
